<compile_context>
chip_gen: v7x
topology: tpu7x:2x2x1
jax: 0.10.0
libtpu: 0.0.40
codegen_flags: <defaults>
</compile_context>

<pallas_src>
import jax
import jax.numpy as jnp
from jax.experimental import pallas as pl
from jax.experimental.pallas import tpu as pltpu

ALPHA = 0.2          # LeakyReLU negative slope
DROPOUT = 0.5        # unused in eval-mode forward
NEG_BIG = -1.0e12    # same mask constant as the PyTorch module


def gat_fused_kernel(feat_ref, w_ref, a_self_ref, a_nb_ref, adj_ref, o_ref,
                     z_ref, an_ref):
    i = pl.program_id(0)

    # ---- phase 0 (first row block only): projection + neighbour logits -----
    @pl.when(i == 0)
    def _():
        # z = X @ W                              -> (Np, out_dim)        [MXU]
        z0 = jnp.dot(feat_ref[...], w_ref[...], preferred_element_type=jnp.float32)
        z_ref[...] = z0
        # attn_nb as a lane-dense (1, Np) row:  a_nb^T . z^T   (q @ k^T pattern)
        an_ref[...] = jax.lax.dot_general(
            a_nb_ref[...], z0,
            dimension_numbers=(((1,), (1,)), ((), ())),
            preferred_element_type=jnp.float32)

    # ---- per row block ------------------------------------------------------
    tn = o_ref.shape[0]
    row0 = pl.multiple_of(i * tn, tn)
    z_blk = z_ref[pl.ds(row0, tn), :]                               # (tn, D)
    # self-attention logits for this row block: VPU mul + XLU lane reduce
    attn_self = jnp.sum(z_blk * a_self_ref[...], axis=-1, keepdims=True)  # (tn, 1)

    e = attn_self + an_ref[...]                                     # (tn, Np)
    e = jnp.maximum(e, ALPHA * e)                                   # LeakyReLU
    # adjacency mask: one compare+select on the packed int8 tile (same semantics
    # as e + (-1e12)*(1-A_): unmasked entries keep e, masked become -1e12)
    att = jnp.where(adj_ref[...] != 0, e, NEG_BIG)
    # numerically stable exact row softmax (full row resident per tile)
    att = att - jnp.max(att, axis=1, keepdims=True)
    p = jnp.exp(att)                                                # EUP
    inv = pl.reciprocal(jnp.sum(p, axis=1, keepdims=True), approx=True)
    att = p * inv
    # TODO(synk): F.dropout on the attention matrix skipped (eval-mode forward).
    # h_tile = attention @ z                    -> (tn, out_dim)         [MXU]
    o_ref[...] = jnp.dot(att, z_ref[...],
                         preferred_element_type=jnp.float32).astype(o_ref.dtype)


def gat_layer(features, A, W, a_self, a_nb, *, row_tile=128):
    N, in_dim = features.shape
    out_dim = W.shape[1]

    tn = min(row_tile, N)
    num_blocks = pl.cdiv(N, tn)
    Np = tn * num_blocks
    if Np != N:
        # zero padding: padded adjacency columns stay masked (-1e12) so padded z
        # rows receive ~0 attention weight; padded output rows are sliced off.
        features = jnp.pad(features, ((0, Np - N), (0, 0)))
        A = jnp.pad(A, ((0, Np - N), (0, Np - N)))

    # A only acts as a boolean mask -> ship as int8 (4x less HBM/VMEM traffic).
    adj_i8 = (A > 0).astype(jnp.int8)
    a_self_row = a_self.reshape(1, out_dim)
    a_nb_row = a_nb.reshape(1, out_dim)

    h = pl.pallas_call(
        gat_fused_kernel,
        out_shape=jax.ShapeDtypeStruct((Np, out_dim), jnp.float32),
        grid=(num_blocks,),
        in_specs=[
            # grid-invariant blocks (fetched once; index map constant).
            # TODO(synk): pipeline_mode=pl.Buffered(1) would drop their second
            # VMEM buffer; left default for maximum lowering compatibility.
            pl.BlockSpec((Np, in_dim), lambda i: (0, 0)),       # features
            pl.BlockSpec((in_dim, out_dim), lambda i: (0, 0)),  # W
            pl.BlockSpec((1, out_dim), lambda i: (0, 0)),       # a_self row
            pl.BlockSpec((1, out_dim), lambda i: (0, 0)),       # a_nb row
            # streamed input: one adjacency row slab per grid step
            pl.BlockSpec((tn, Np), lambda i: (i, 0)),           # adjacency (int8)
        ],
        # NOTE: out_dim=16 keeps the output store lane-sparse; single-head, so
        # accepted (head fusion to 128 lanes would fix it for multi-head models).
        out_specs=pl.BlockSpec((tn, out_dim), lambda i: (i, 0)),
        scratch_shapes=[
            pltpu.VMEM((Np, out_dim), jnp.float32),  # z, computed once at step 0
            pltpu.VMEM((1, Np), jnp.float32),        # attn_nb row (lane-dense)
        ],
        compiler_params=pltpu.CompilerParams(
            # 'arbitrary' (sequential): step-0 scratch init must be visible to
            # every later row block.
            dimension_semantics=("arbitrary",),
            vmem_limit_bytes=40 * 1024 * 1024,       # fits v5e/v6e/v7x budgets
        ),
    )(features, W, a_self_row, a_nb_row, adj_i8)

    return h[:N] if Np != N else h


def gat_reference(features, A, W, a_self, a_nb):
    """Pure-JAX reference matching the PyTorch forward (eval mode)."""
    hi = jax.lax.Precision.HIGHEST
    z = jnp.dot(features, W, precision=hi)
    e = jnp.dot(z, a_self, precision=hi) + jnp.dot(z, a_nb, precision=hi).T
    e = jnp.where(e > 0, e, ALPHA * e)
    A_ = jnp.where(A > 0, 1.0, 0.0)
    att = e + NEG_BIG * (1.0 - A_)
    att = jax.nn.softmax(att, axis=1)
    return jnp.dot(att, z, precision=hi)


def xavier_uniform(key, shape, gain):
    fan_in, fan_out = shape[0], shape[1]
    bound = gain * jnp.sqrt(6.0 / (fan_in + fan_out))
    return jax.random.uniform(key, shape, jnp.float32, -bound, bound)


if __name__ == "__main__":
    N = 64        # number of graph nodes
    IN_DIM = 32
    OUT_DIM = 16

    key = jax.random.PRNGKey(0)
    k_feat, k_adj, k_w, k_as, k_an = jax.random.split(key, 5)

    features = jax.random.normal(k_feat, (N, IN_DIM), jnp.float32)

    # random sparse-ish binary adjacency; ensure every node has a self edge
    adj = (jax.random.uniform(k_adj, (N, N)) > 0.7).astype(jnp.float32)
    adj = jnp.maximum(adj, jnp.eye(N, dtype=jnp.float32))

    # deterministic xavier_uniform init (gain=1.414) matching the module's __init__
    W = xavier_uniform(k_w, (IN_DIM, OUT_DIM), 1.414)
    a_self = xavier_uniform(k_as, (OUT_DIM, 1), 1.414)
    a_nb = xavier_uniform(k_an, (OUT_DIM, 1), 1.414)

    h = gat_layer(features, adj, W, a_self, a_nb)
    jax.block_until_ready(h)

    assert h.shape == (N, OUT_DIM)
    assert bool(jnp.all(jnp.isfinite(h)))
    ref = gat_reference(features, adj, W, a_self, a_nb)
    max_err = float(jnp.max(jnp.abs(h - ref)))
    assert max_err < 5e-2, f"max abs err {max_err}"
    print("KERNEL_OK")
</pallas_src>

<mosaic_0001>
module attributes {stable_mosaic.version = 11 : i64} {
  func.func @gat_fused_kernel(%arg0: i32, %arg1: memref<64x32xf32, #tpu.memory_space<vmem>>, %arg2: memref<32x16xf32, #tpu.memory_space<vmem>>, %arg3: memref<1x16xf32, #tpu.memory_space<vmem>>, %arg4: memref<1x16xf32, #tpu.memory_space<vmem>>, %arg5: memref<64x64xi8, #tpu.memory_space<vmem>>, %arg6: memref<64x16xf32, #tpu.memory_space<vmem>>, %arg7: memref<64x16xf32, #tpu.memory_space<vmem>>, %arg8: memref<1x64xf32, #tpu.memory_space<vmem>>) attributes {dimension_semantics = [#tpu.dimension_semantics<arbitrary>], iteration_bounds = array<i64: 1>, scalar_prefetch = 0 : i64, scratch_operands = 2 : i64, tpu.core_type = #tpu.core_type<tc>, window_params = [{pipeline_mode = #tpu.pipeline_mode<synchronous>, transform_indices = @transform_0, window_bounds = array<i64: 64, 32>}, {pipeline_mode = #tpu.pipeline_mode<synchronous>, transform_indices = @transform_1, window_bounds = array<i64: 32, 16>}, {pipeline_mode = #tpu.pipeline_mode<synchronous>, transform_indices = @transform_2, window_bounds = array<i64: 1, 16>}, {pipeline_mode = #tpu.pipeline_mode<synchronous>, transform_indices = @transform_3, window_bounds = array<i64: 1, 16>}, {transform_indices = @transform_4, window_bounds = array<i64: 64, 64>}, {transform_indices = @transform_5, window_bounds = array<i64: 64, 16>}]} {
    %c0_i32 = arith.constant 0 : i32
    %0 = arith.cmpi eq, %arg0, %c0_i32 : i32
    %1 = arith.extui %0 : i1 to i32
    %c0_i32_0 = arith.constant 0 : i32
    %2 = arith.cmpi ne, %1, %c0_i32_0 : i32
    scf.if %2 {
      %c0_16 = arith.constant 0 : index
      %c0_17 = arith.constant 0 : index
      %37 = vector.load %arg1[%c0_16, %c0_17] : memref<64x32xf32, #tpu.memory_space<vmem>>, vector<64x32xf32>
      %c0_18 = arith.constant 0 : index
      %c0_19 = arith.constant 0 : index
      %38 = vector.load %arg2[%c0_18, %c0_19] : memref<32x16xf32, #tpu.memory_space<vmem>>, vector<32x16xf32>
      %cst_20 = arith.constant dense<0.000000e+00> : vector<64x16xf32>
      %39 = tpu.matmul %37, %38, %cst_20 {dimension_numbers = #tpu.dot_dimension_numbers<[1], [0], [0], [1], [0, 0, 1, 1], [], []>} : vector<64x32xf32>, vector<32x16xf32>, vector<64x16xf32> -> vector<64x16xf32>
      %c0_21 = arith.constant 0 : index
      %c0_22 = arith.constant 0 : index
      %40 = vector.load %arg7[%c0_21, %c0_22] : memref<64x16xf32, #tpu.memory_space<vmem>>, vector<64x16xf32>
      tpu.vector_store %arg7[%c0_21, %c0_22], %39 {strides = array<i32>} : memref<64x16xf32, #tpu.memory_space<vmem>>, vector<64x16xf32>,
      %c0_23 = arith.constant 0 : index
      %c0_24 = arith.constant 0 : index
      %41 = vector.load %arg4[%c0_23, %c0_24] : memref<1x16xf32, #tpu.memory_space<vmem>>, vector<1x16xf32>
      %cst_25 = arith.constant dense<0.000000e+00> : vector<1x64xf32>
      %42 = tpu.matmul %41, %39, %cst_25 {dimension_numbers = #tpu.dot_dimension_numbers<[1], [1], [0], [0], [0, 0, 1, 0], [], []>} : vector<1x16xf32>, vector<64x16xf32>, vector<1x64xf32> -> vector<1x64xf32>
      %c0_26 = arith.constant 0 : index
      %c0_27 = arith.constant 0 : index
      %43 = vector.load %arg8[%c0_26, %c0_27] : memref<1x64xf32, #tpu.memory_space<vmem>>, vector<1x64xf32>
      tpu.vector_store %arg8[%c0_26, %c0_27], %42 {strides = array<i32>} : memref<1x64xf32, #tpu.memory_space<vmem>>, vector<1x64xf32>,
    } else {
    }
    %c64_i32 = arith.constant 64 : i32
    %3 = arith.muli %arg0, %c64_i32 : i32
    %4 = tpu.assume_multiple %3, 64 : i32
    %5 = arith.index_cast %4 : i32 to index
    %c0 = arith.constant 0 : index
    %6 = vector.load %arg7[%5, %c0] : memref<64x16xf32, #tpu.memory_space<vmem>>, vector<64x16xf32>
    %c0_1 = arith.constant 0 : index
    %c0_2 = arith.constant 0 : index
    %7 = vector.load %arg3[%c0_1, %c0_2] : memref<1x16xf32, #tpu.memory_space<vmem>>, vector<1x16xf32>
    %8 = vector.broadcast %7 : vector<1x16xf32> to vector<64x16xf32>
    %9 = arith.mulf %6, %8 : vector<64x16xf32>
    %cst = arith.constant dense<0.000000e+00> : vector<64xf32>
    %10 = vector.multi_reduction <add>, %9, %cst [1] : vector<64x16xf32> to vector<64xf32>
    %11 = vector.shape_cast %10 : vector<64xf32> to vector<64x1xf32>
    %c0_3 = arith.constant 0 : index
    %c0_4 = arith.constant 0 : index
    %12 = vector.load %arg8[%c0_3, %c0_4] : memref<1x64xf32, #tpu.memory_space<vmem>>, vector<1x64xf32>
    %13 = vector.broadcast %11 : vector<64x1xf32> to vector<64x64xf32>
    %14 = vector.broadcast %12 : vector<1x64xf32> to vector<64x64xf32>
    %15 = arith.addf %13, %14 : vector<64x64xf32>
    %cst_5 = arith.constant 2.000000e-01 : f32
    %16 = vector.broadcast %cst_5 : f32 to vector<64x64xf32>
    %17 = arith.mulf %16, %15 : vector<64x64xf32>
    %18 = arith.maximumf %15, %17 : vector<64x64xf32>
    %c0_6 = arith.constant 0 : index
    %c0_7 = arith.constant 0 : index
    %19 = vector.load %arg5[%c0_6, %c0_7] : memref<64x64xi8, #tpu.memory_space<vmem>>, vector<64x64xi8>
    %c0_i8 = arith.constant 0 : i8
    %20 = vector.broadcast %c0_i8 : i8 to vector<64x64xi8>
    %21 = arith.cmpi ne, %19, %20 : vector<64x64xi8>
    %cst_8 = arith.constant -9.99999995E+11 : f32
    %22 = vector.broadcast %cst_8 : f32 to vector<64x64xf32>
    %23 = arith.select %21, %18, %22 : vector<64x64xi1>, vector<64x64xf32>
    %cst_9 = arith.constant dense<0xFF800000> : vector<64xf32>
    %24 = vector.multi_reduction <maximumf>, %23, %cst_9 [1] : vector<64x64xf32> to vector<64xf32>
    %25 = vector.shape_cast %24 : vector<64xf32> to vector<64x1xf32>
    %26 = vector.broadcast %25 : vector<64x1xf32> to vector<64x64xf32>
    %27 = arith.subf %23, %26 : vector<64x64xf32>
    %28 = math.exp %27 : vector<64x64xf32>
    %cst_10 = arith.constant dense<0.000000e+00> : vector<64xf32>
    %29 = vector.multi_reduction <add>, %28, %cst_10 [1] : vector<64x64xf32> to vector<64xf32>
    %30 = vector.shape_cast %29 : vector<64xf32> to vector<64x1xf32>
    %31 = tpu.reciprocal %30 {approx = true} : vector<64x1xf32> -> vector<64x1xf32>
    %32 = vector.broadcast %31 : vector<64x1xf32> to vector<64x64xf32>
    %33 = arith.mulf %28, %32 : vector<64x64xf32>
    %c0_11 = arith.constant 0 : index
    %c0_12 = arith.constant 0 : index
    %34 = vector.load %arg7[%c0_11, %c0_12] : memref<64x16xf32, #tpu.memory_space<vmem>>, vector<64x16xf32>
    %cst_13 = arith.constant dense<0.000000e+00> : vector<64x16xf32>
    %35 = tpu.matmul %33, %34, %cst_13 {dimension_numbers = #tpu.dot_dimension_numbers<[1], [0], [0], [1], [0, 0, 1, 1], [], []>} : vector<64x64xf32>, vector<64x16xf32>, vector<64x16xf32> -> vector<64x16xf32>
    %c0_14 = arith.constant 0 : index
    %c0_15 = arith.constant 0 : index
    %36 = vector.load %arg6[%c0_14, %c0_15] : memref<64x16xf32, #tpu.memory_space<vmem>>, vector<64x16xf32>
    tpu.vector_store %arg6[%c0_14, %c0_15], %35 {strides = array<i32>} : memref<64x16xf32, #tpu.memory_space<vmem>>, vector<64x16xf32>,
    return
  }
  func.func @transform_0(%arg0: i32) -> (i32, i32) {
    %c0_i32 = arith.constant 0 : i32
    %c0_i32_0 = arith.constant 0 : i32
    %c0_i32_1 = arith.constant 0 : i32
    return %c0_i32, %c0_i32_0 : i32, i32
  }
  func.func @transform_1(%arg0: i32) -> (i32, i32) {
    %c0_i32 = arith.constant 0 : i32
    %c0_i32_0 = arith.constant 0 : i32
    %c0_i32_1 = arith.constant 0 : i32
    return %c0_i32, %c0_i32_0 : i32, i32
  }
  func.func @transform_2(%arg0: i32) -> (i32, i32) {
    %c0_i32 = arith.constant 0 : i32
    %c0_i32_0 = arith.constant 0 : i32
    %c0_i32_1 = arith.constant 0 : i32
    return %c0_i32, %c0_i32_0 : i32, i32
  }
  func.func @transform_3(%arg0: i32) -> (i32, i32) {
    %c0_i32 = arith.constant 0 : i32
    %c0_i32_0 = arith.constant 0 : i32
    %c0_i32_1 = arith.constant 0 : i32
    return %c0_i32, %c0_i32_0 : i32, i32
  }
  func.func @transform_4(%arg0: i32) -> (i32, i32) {
    %c0_i32 = arith.constant 0 : i32
    %c0_i32_0 = arith.constant 0 : i32
    return %arg0, %c0_i32 : i32, i32
  }
  func.func @transform_5(%arg0: i32) -> (i32, i32) {
    %c0_i32 = arith.constant 0 : i32
    %c0_i32_0 = arith.constant 0 : i32
    return %arg0, %c0_i32 : i32, i32
  }
}

</mosaic_0001>

<llo_original>
// kernel: tpu_custom_call.1
$region0: #{tpu_custom_call.1}
  #allocation0 [shape = 'u32[]', space=smem, size = 0x4, offset = 0x4, fixed_abs, tag = 'smem constant byte address 0x4 - core index']
  #allocation1 [shape = 'u32[144,128]{1,0:T(1,128)}', space=vmem, size = 0x12000, scoped, tag = 'internal scratch']
  #allocation2 [shape = 'f32[64,16]{1,0:T(8,128)}', space=vmem, size = 0x8000, scoped, tag = 'scratch operand']
  #allocation3 [shape = 'f32[1,64]{1,0:T(1,128)}', space=vmem, size = 0x200, scoped, tag = 'scratch operand']
  %s0 = inlined_call_operand.vmem [shape: f32[64,32], index: 0, kind: input, shape index: {}]
  %s1 = inlined_call_operand.vmem [shape: f32[32,16], index: 1, kind: input, shape index: {}]
  %s2 = inlined_call_operand.vmem [shape: f32[1,16], index: 2, kind: input, shape index: {}]
  %s3 = inlined_call_operand.vmem [shape: f32[1,16], index: 3, kind: input, shape index: {}]
  %s4 = inlined_call_operand.vmem [shape: s8[64,64], index: 4, kind: input, shape index: {}]
  %s5 = inlined_call_operand.vmem [shape: f32[64,16], index: 5, kind: output, shape index: {}]
  %s6 = sld [smem:[#allocation0]]
  $region34: #{tpu_custom_call.1} parent=0
    _
  %s8 = ssub.s32 1, %s6
  %s9 = scalar_select 0, %s8, %s6
  // Predicated region
  $region2: #{tpu_custom_call.1} parent=0 // pred_check
    _
  $region3: #{tpu_custom_call.1} parent=0 // pred_check_branch
    %11 = sbr.rel (0) target = $region5
  $region4: #{tpu_custom_call.1} parent=0 // pred_region
    _
  $region5: #{tpu_custom_call.1} parent=0 // pred_fallthru
    _
  // Predicated region
  $region6: #{tpu_custom_call.1} parent=0 // pred_check
    _
  $region7: #{tpu_custom_call.1} parent=0 // pred_check_branch
    %13 = sbr.rel (0) target = $region9
  $region8: #{tpu_custom_call.1} parent=0 // pred_region
    _
  $region9: #{tpu_custom_call.1} parent=0 // pred_fallthru
    _
  // Predicated region
  $region10: #{tpu_custom_call.1} parent=0 // pred_check
    _
  $region11: #{tpu_custom_call.1} parent=0 // pred_check_branch
    %15 = sbr.rel (0) target = $region13
  $region12: #{tpu_custom_call.1} parent=0 // pred_region
    _
  $region13: #{tpu_custom_call.1} parent=0 // pred_fallthru
    _
  // Predicated region
  $region14: #{tpu_custom_call.1} parent=0 // pred_check
    _
  $region15: #{tpu_custom_call.1} parent=0 // pred_check_branch
    %17 = sbr.rel (0) target = $region17
  $region16: #{tpu_custom_call.1} parent=0 // pred_region
    _
  $region17: #{tpu_custom_call.1} parent=0 // pred_fallthru
    _
  // Predicated region
  $region18: #{tpu_custom_call.1} parent=0 // pred_check
    _
  $region19: #{tpu_custom_call.1} parent=0 // pred_check_branch
    %19 = sbr.rel (0) target = $region21
  $region20: #{tpu_custom_call.1} parent=0 // pred_region
    _
  $region21: #{tpu_custom_call.1} parent=0 // pred_fallthru
    _
  %p22 = scmp.eq.s32.totalorder 0, 0
  // Predicated region
  $region22: #{tpu_custom_call.1} parent=0 // pred_check
    %p23 = pneg %p22
  $region23: #{tpu_custom_call.1} parent=0 // pred_check_branch
    %25 = sbr.rel (%p23) target = $region25
  $region24: #{tpu_custom_call.1} parent=0 // pred_region
    %v26 = vld [vmem:[%s0] sm:$0xff]
    %v27 = vld [vmem:[%s0 + $0x8] sm:$0xff]
    %v28 = vld [vmem:[%s0 + $0x10] sm:$0xff]
    %v29 = vld [vmem:[%s0 + $0x18] sm:$0xff]
    %v30 = vld [vmem:[%s0 + $0x20] sm:$0xff]
    %v31 = vld [vmem:[%s0 + $0x28] sm:$0xff]
    %v32 = vld [vmem:[%s0 + $0x30] sm:$0xff]
    %v33 = vld [vmem:[%s0 + $0x38] sm:$0xff]
    %v34 = vld [vmem:[%s1] sm:$0xff]
    %v35 = vld [vmem:[%s1 + $0x8] sm:$0xff]
    %v36 = vld [vmem:[%s1 + $0x10] sm:$0xff]
    %v37 = vld [vmem:[%s1 + $0x18] sm:$0xff]
    %vm38 = vcmask 261120
    %v40 = vsel %vm38, %v26, 0
    %v43 = vsel %vm38, %v27, 0
    %v46 = vsel %vm38, %v28, 0
    %v49 = vsel %vm38, %v29, 0
    %v52 = vsel %vm38, %v30, 0
    %v55 = vsel %vm38, %v31, 0
    %v58 = vsel %vm38, %v32, 0
    %v61 = vsel %vm38, %v33, 0
    %63 = vmatprep.subr.mxu0 0.0
    %64 = vmatpush1.msra.mxu0 %v34
    %65 = vmatprep.subr.mxu0 0.0
    %66 = vmatpush1.msra.mxu0 %v35
    %67 = vmatprep.subr.mxu0 0.0
    %68 = vmatpush1.msra.mxu0 %v36
    %69 = vmatprep.subr.mxu0 0.0
    %70 = vmatpush1.msra.mxu0 %v37
    %71 = vmatprep.subr.mxu0 0.0
    %72 = vmatpush1.msra.mxu0 0.0
    %73 = vmatprep.subr.mxu0 0.0
    %74 = vmatpush1.msra.mxu0 0.0
    %75 = vmatprep.subr.mxu0 0.0
    %76 = vmatpush1.msra.mxu0 0.0
    %77 = vmatprep.subr.mxu0 0.0
    %78 = vmatpush1.msra.mxu0 0.0
    %79 = vmatprep.subr.mxu0 0.0
    %80 = vmatpush1.msra.mxu0 0.0
    %81 = vmatprep.subr.mxu0 0.0
    %82 = vmatpush1.msra.mxu0 0.0
    %83 = vmatprep.subr.mxu0 0.0
    %84 = vmatpush1.msra.mxu0 0.0
    %85 = vmatprep.subr.mxu0 0.0
    %86 = vmatpush1.msra.mxu0 0.0
    %87 = vmatprep.subr.mxu0 0.0
    %88 = vmatpush1.msra.mxu0 0.0
    %89 = vmatprep.subr.mxu0 0.0
    %90 = vmatpush1.msra.mxu0 0.0
    %91 = vmatprep.subr.mxu0 0.0
    %92 = vmatpush1.msra.mxu0 0.0
    %93 = vmatprep.subr.mxu0 0.0
    %94 = vmatpush1.msra.mxu0 0.0
    %95 = vmatprep.subr.mxu0 0.0
    %96 = vmatpush1.msra.mxu0 0.0
    %97 = vmatprep.subr.mxu0 0.0
    %98 = vmatpush1.msra.mxu0 0.0
    %99 = vmatprep.subr.mxu0 0.0
    %100 = vmatpush1.msra.mxu0 0.0
    %101 = vmatprep.subr.mxu0 0.0
    %102 = vmatpush1.msra.mxu0 0.0
    %103 = vmatprep.subr.mxu0 0.0
    %104 = vmatpush1.msra.mxu0 0.0
    %105 = vmatprep.subr.mxu0 0.0
    %106 = vmatpush1.msra.mxu0 0.0
    %107 = vmatprep.subr.mxu0 0.0
    %108 = vmatpush1.msra.mxu0 0.0
    %109 = vmatprep.subr.mxu0 0.0
    %110 = vmatpush1.msra.mxu0 0.0
    %111 = vmatprep.subr.mxu0 0.0
    %112 = vmatpush1.msra.mxu0 0.0
    %113 = vmatprep.subr.mxu0 0.0
    %114 = vmatpush1.msra.mxu0 0.0
    %115 = vmatprep.subr.mxu0 0.0
    %116 = vmatpush1.msra.mxu0 0.0
    %117 = vmatprep.subr.mxu0 0.0
    %118 = vmatpush1.msra.mxu0 0.0
    %119 = vmatprep.subr.mxu0 0.0
    %120 = vmatpush1.msra.mxu0 0.0
    %121 = vmatprep.subr.mxu0 0.0
    %122 = vmatpush1.msra.mxu0 0.0
    %123 = vmatprep.subr.mxu0 0.0
    %124 = vmatpush1.msra.mxu0 0.0
    %125 = vmatprep.subr.mxu0 0.0
    %126 = vmatpush1.msra.mxu0 0.0
    %127 = vmatprep.mubr.f32.mxu0 0.0
    %128 = vmatmul.mubr.f32.gmra.mrb[0].mxu0 %v40
    %v129 = vpop.f32.mrb[0].mxu0
    %v130 = vadd.f32 0.0, %v129
    %v131 = vpop.f32.mrb[0].mxu0
    %132 = vmatprep.mubr.f32.mxu0 0.0
    %133 = vmatmul.mubr.f32.gmra.mrb[0].mxu0 %v43
    %v134 = vpop.f32.mrb[0].mxu0
    %v135 = vadd.f32 0.0, %v134
    %v136 = vpop.f32.mrb[0].mxu0
    %137 = vmatprep.mubr.f32.mxu0 0.0
    %138 = vmatmul.mubr.f32.gmra.mrb[0].mxu0 %v46
    %v139 = vpop.f32.mrb[0].mxu0
    %v140 = vadd.f32 0.0, %v139
    %v141 = vpop.f32.mrb[0].mxu0
    %142 = vmatprep.mubr.f32.mxu0 0.0
    %143 = vmatmul.mubr.f32.gmra.mrb[0].mxu0 %v49
    %v144 = vpop.f32.mrb[0].mxu0
    %v145 = vadd.f32 0.0, %v144
    %v146 = vpop.f32.mrb[0].mxu0
    %147 = vmatprep.mubr.f32.mxu0 0.0
    %148 = vmatmul.mubr.f32.gmra.mrb[0].mxu0 %v52
    %v149 = vpop.f32.mrb[0].mxu0
    %v150 = vadd.f32 0.0, %v149
    %v151 = vpop.f32.mrb[0].mxu0
    %152 = vmatprep.mubr.f32.mxu0 0.0
    %153 = vmatmul.mubr.f32.gmra.mrb[0].mxu0 %v55
    %v154 = vpop.f32.mrb[0].mxu0
    %v155 = vadd.f32 0.0, %v154
    %v156 = vpop.f32.mrb[0].mxu0
    %157 = vmatprep.mubr.f32.mxu0 0.0
    %158 = vmatmul.mubr.f32.gmra.mrb[0].mxu0 %v58
    %v159 = vpop.f32.mrb[0].mxu0
    %v160 = vadd.f32 0.0, %v159
    %v161 = vpop.f32.mrb[0].mxu0
    %162 = vmatprep.mubr.f32.mxu0 0.0
    %163 = vmatmul.mubr.f32.gmra.mrb[0].mxu0 %v61
    %v164 = vpop.f32.mrb[0].mxu0
    %v165 = vadd.f32 0.0, %v164
    %v166 = vpop.f32.mrb[0].mxu0
    %167 = vdwg.mxu0
    %vm168 = vcmask 130048
    %169 = vst.msk [vmem:[#allocation2] sm:$0xff] %vm168, %v130
    %170 = vst.msk [vmem:[#allocation2 + $0x8] sm:$0xff] %vm168, %v135
    %171 = vst.msk [vmem:[#allocation2 + $0x10] sm:$0xff] %vm168, %v140
    %172 = vst.msk [vmem:[#allocation2 + $0x18] sm:$0xff] %vm168, %v145
    %173 = vst.msk [vmem:[#allocation2 + $0x20] sm:$0xff] %vm168, %v150
    %174 = vst.msk [vmem:[#allocation2 + $0x28] sm:$0xff] %vm168, %v155
    %175 = vst.msk [vmem:[#allocation2 + $0x30] sm:$0xff] %vm168, %v160
    %176 = vst.msk [vmem:[#allocation2 + $0x38] sm:$0xff] %vm168, %v165
    %v177 = vld [vmem:[%s3] sm:$0x1]
    %v179 = vsel %vm168, %v177, 0
    %v182 = vsel %vm168, %v130, 0
    %v185 = vsel %vm168, %v135, 0
    %v188 = vsel %vm168, %v140, 0
    %v191 = vsel %vm168, %v145, 0
    %v194 = vsel %vm168, %v150, 0
    %v197 = vsel %vm168, %v155, 0
    %v200 = vsel %vm168, %v160, 0
    %v203 = vsel %vm168, %v165, 0
    %205 = vmatprep.subr.mxu0 0.0
    %206 = vmatpush1.xpose.msra.mxu0 %v182
    %207 = vmatprep.subr.mxu0 0.0
    %208 = vmatpush1.xpose.msra.mxu0 %v185
    %209 = vmatprep.subr.mxu0 0.0
    %210 = vmatpush1.xpose.msra.mxu0 %v188
    %211 = vmatprep.subr.mxu0 0.0
    %212 = vmatpush1.xpose.msra.mxu0 %v191
    %213 = vmatprep.subr.mxu0 0.0
    %214 = vmatpush1.xpose.msra.mxu0 %v194
    %215 = vmatprep.subr.mxu0 0.0
    %216 = vmatpush1.xpose.msra.mxu0 %v197
    %217 = vmatprep.subr.mxu0 0.0
    %218 = vmatpush1.xpose.msra.mxu0 %v200
    %219 = vmatprep.subr.mxu0 0.0
    %220 = vmatpush1.xpose.msra.mxu0 %v203
    %221 = vmatprep.subr.mxu0 0.0
    %222 = vmatpush1.xpose.msra.mxu0 0.0
    %223 = vmatprep.subr.mxu0 0.0
    %224 = vmatpush1.xpose.msra.mxu0 0.0
    %225 = vmatprep.subr.mxu0 0.0
    %226 = vmatpush1.xpose.msra.mxu0 0.0
    %227 = vmatprep.subr.mxu0 0.0
    %228 = vmatpush1.xpose.msra.mxu0 0.0
    %229 = vmatprep.subr.mxu0 0.0
    %230 = vmatpush1.xpose.msra.mxu0 0.0
    %231 = vmatprep.subr.mxu0 0.0
    %232 = vmatpush1.xpose.msra.mxu0 0.0
    %233 = vmatprep.subr.mxu0 0.0
    %234 = vmatpush1.xpose.msra.mxu0 0.0
    %235 = vmatprep.subr.mxu0 0.0
    %236 = vmatpush1.xpose.msra.mxu0 0.0
    %237 = vmatprep.subr.mxu0 0.0
    %238 = vmatpush1.xpose.msra.mxu0 0.0
    %239 = vmatprep.subr.mxu0 0.0
    %240 = vmatpush1.xpose.msra.mxu0 0.0
    %241 = vmatprep.subr.mxu0 0.0
    %242 = vmatpush1.xpose.msra.mxu0 0.0
    %243 = vmatprep.subr.mxu0 0.0
    %244 = vmatpush1.xpose.msra.mxu0 0.0
    %245 = vmatprep.subr.mxu0 0.0
    %246 = vmatpush1.xpose.msra.mxu0 0.0
    %247 = vmatprep.subr.mxu0 0.0
    %248 = vmatpush1.xpose.msra.mxu0 0.0
    %249 = vmatprep.subr.mxu0 0.0
    %250 = vmatpush1.xpose.msra.mxu0 0.0
    %251 = vmatprep.subr.mxu0 0.0
    %252 = vmatpush1.xpose.msra.mxu0 0.0
    %253 = vmatprep.subr.mxu0 0.0
    %254 = vmatpush1.xpose.msra.mxu0 0.0
    %255 = vmatprep.subr.mxu0 0.0
    %256 = vmatpush1.xpose.msra.mxu0 0.0
    %257 = vmatprep.subr.mxu0 0.0
    %258 = vmatpush1.xpose.msra.mxu0 0.0
    %259 = vmatprep.subr.mxu0 0.0
    %260 = vmatpush1.xpose.msra.mxu0 0.0
    %261 = vmatprep.subr.mxu0 0.0
    %262 = vmatpush1.xpose.msra.mxu0 0.0
    %263 = vmatprep.subr.mxu0 0.0
    %264 = vmatpush1.xpose.msra.mxu0 0.0
    %265 = vmatprep.subr.mxu0 0.0
    %266 = vmatpush1.xpose.msra.mxu0 0.0
    %267 = vmatprep.subr.mxu0 0.0
    %268 = vmatpush1.xpose.msra.mxu0 0.0
    %269 = vmatprep.mubr.f32.mxu0 0.0
    %270 = vmatmul.mubr.f32.gmra.mrb[0].mxu0 %v179
    %v271 = vpop.f32.mrb[0].mxu0
    %v272 = vadd.f32 0.0, %v271
    %v273 = vpop.f32.mrb[0].mxu0
    %274 = vdwg.mxu0
    %vm275 = vcmask 516096
    %276 = vst.msk [vmem:[#allocation3] sm:$0x1] %vm275, %v272
  $region25: #{tpu_custom_call.1} parent=0 // pred_fallthru
    _
  %s277 = smul.u32 0, 64
  %s278 = scalar_lea.vmem [#allocation2], %s277
  %v279 = vld [vmem:[%s278] sm:$0xff]
  %v280 = vld [vmem:[%s278 + $0x8] sm:$0xff]
  %v281 = vld [vmem:[%s278 + $0x10] sm:$0xff]
  %v282 = vld [vmem:[%s278 + $0x18] sm:$0xff]
  %v283 = vld [vmem:[%s278 + $0x20] sm:$0xff]
  %v284 = vld [vmem:[%s278 + $0x28] sm:$0xff]
  %v285 = vld [vmem:[%s278 + $0x30] sm:$0xff]
  %v286 = vld [vmem:[%s278 + $0x38] sm:$0xff]
  %v287 = vld [vmem:[%s2] sm:$0x1]
  %v289 = vlaneseq
  %v290 = vshrl.u32 %v289, 7
  %v291 = vsub.s32 0, %v290
  %v292 = vrot.slane %v287, %v291
  %v294 = vmul.f32 %v279, %v292
  %v295 = vmul.f32 %v280, %v292
  %v296 = vmul.f32 %v281, %v292
  %v297 = vmul.f32 %v282, %v292
  %v298 = vmul.f32 %v283, %v292
  %v299 = vmul.f32 %v284, %v292
  %v300 = vmul.f32 %v285, %v292
  %v301 = vmul.f32 %v286, %v292
  %vm302 = vcmask 130048
  %v303 = vsel %vm302, %v294, 0.0
  %304 = vadd.xlane.f32.xlu0 %v303
  %v305 = vpop.xlane.xlu0 %304
  %v306 = vsel %vm302, %v295, 0.0
  %307 = vadd.xlane.f32.xlu0 %v306
  %v308 = vpop.xlane.xlu0 %307
  %v309 = vsel %vm302, %v296, 0.0
  %310 = vadd.xlane.f32.xlu0 %v309
  %v311 = vpop.xlane.xlu0 %310
  %v312 = vsel %vm302, %v297, 0.0
  %313 = vadd.xlane.f32.xlu0 %v312
  %v314 = vpop.xlane.xlu0 %313
  %v315 = vsel %vm302, %v298, 0.0
  %316 = vadd.xlane.f32.xlu0 %v315
  %v317 = vpop.xlane.xlu0 %316
  %v318 = vsel %vm302, %v299, 0.0
  %319 = vadd.xlane.f32.xlu0 %v318
  %v320 = vpop.xlane.xlu0 %319
  %v321 = vsel %vm302, %v300, 0.0
  %322 = vadd.xlane.f32.xlu0 %v321
  %v323 = vpop.xlane.xlu0 %322
  %v324 = vsel %vm302, %v301, 0.0
  %325 = vadd.xlane.f32.xlu0 %v324
  %v326 = vpop.xlane.xlu0 %325
  %v327 = vld [vmem:[#allocation3] sm:$0x1]
  %v329 = vlaneseq
  %v330 = vshrl.u32 %v329, 7
  %v331 = vsub.s32 0, %v330
  %v332 = vrot.slane %v327, %v331
  %v334 = vadd.f32 %v305, %v332
  %v335 = vadd.f32 %v308, %v332
  %v336 = vadd.f32 %v311, %v332
  %v337 = vadd.f32 %v314, %v332
  %v338 = vadd.f32 %v317, %v332
  %v339 = vadd.f32 %v320, %v332
  %v340 = vadd.f32 %v323, %v332
  %v341 = vadd.f32 %v326, %v332
  %v342 = vmul.f32 %v334, 0.2
  %v343 = vmul.f32 %v335, 0.2
  %v344 = vmul.f32 %v336, 0.2
  %v345 = vmul.f32 %v337, 0.2
  %v346 = vmul.f32 %v338, 0.2
  %v347 = vmul.f32 %v339, 0.2
  %v348 = vmul.f32 %v340, 0.2
  %v349 = vmul.f32 %v341, 0.2
  %v350 = vmax.f32 %v334, %v342
  %v351 = vmax.f32 %v335, %v343
  %v352 = vmax.f32 %v336, %v344
  %v353 = vmax.f32 %v337, %v345
  %v354 = vmax.f32 %v338, %v346
  %v355 = vmax.f32 %v339, %v347
  %v356 = vmax.f32 %v340, %v348
  %v357 = vmax.f32 %v341, %v349
  %v358 = vld [vmem:[%s4] sm:$0xff]
  %v359 = vld [vmem:[%s4 + $0x8] sm:$0xff]
  %vm360 = vnez %v358
  %vm361 = vnez %v359
  %v362 = vsel %vm360, 16843009, 0
  %v363 = vsel %vm361, 16843009, 0
  %v364 = vunpack.c.0.s8 %v362
  %v365 = vunpack.c.1.s8 %v362
  %v366 = vunpack.c.2.s8 %v362
  %v367 = vunpack.c.3.s8 %v362
  %v368 = vunpack.c.0.s8 %v363
  %v369 = vunpack.c.1.s8 %v363
  %v370 = vunpack.c.2.s8 %v363
  %v371 = vunpack.c.3.s8 %v363
  %v372 = vpack.c.b16 %v364, %v364
  %v373 = vpack.c.b8 %v372, %v372
  %v374 = vpack.c.b16 %v365, %v365
  %v375 = vpack.c.b8 %v374, %v374
  %v376 = vpack.c.b16 %v366, %v366
  %v377 = vpack.c.b8 %v376, %v376
  %v378 = vpack.c.b16 %v367, %v367
  %v379 = vpack.c.b8 %v378, %v378
  %v380 = vpack.c.b16 %v368, %v368
  %v381 = vpack.c.b8 %v380, %v380
  %v382 = vpack.c.b16 %v369, %v369
  %v383 = vpack.c.b8 %v382, %v382
  %v384 = vpack.c.b16 %v370, %v370
  %v385 = vpack.c.b8 %v384, %v384
  %v386 = vpack.c.b16 %v371, %v371
  %v387 = vpack.c.b8 %v386, %v386
  %vm388 = vnez %v373
  %vm389 = vnez %v375
  %vm390 = vnez %v377
  %vm391 = vnez %v379
  %vm392 = vnez %v381
  %vm393 = vnez %v383
  %vm394 = vnez %v385
  %vm395 = vnez %v387
  %v396 = vsel %vm388, 16843009, 0
  %v397 = vsel %vm389, 16843009, 0
  %v398 = vsel %vm390, 16843009, 0
  %v399 = vsel %vm391, 16843009, 0
  %v400 = vsel %vm392, 16843009, 0
  %v401 = vsel %vm393, 16843009, 0
  %v402 = vsel %vm394, 16843009, 0
  %v403 = vsel %vm395, 16843009, 0
  %v404 = vunpack.c.0.s8 %v396
  %v405 = vunpack.c.0.s8 %v397
  %v406 = vunpack.c.0.s8 %v398
  %v407 = vunpack.c.0.s8 %v399
  %v408 = vunpack.c.0.s8 %v400
  %v409 = vunpack.c.0.s8 %v401
  %v410 = vunpack.c.0.s8 %v402
  %v411 = vunpack.c.0.s8 %v403
  %vm412 = vcmp.ne.s32.totalorder %v404, 0
  %vm413 = vcmp.ne.s32.totalorder %v405, 0
  %vm414 = vcmp.ne.s32.totalorder %v406, 0
  %vm415 = vcmp.ne.s32.totalorder %v407, 0
  %vm416 = vcmp.ne.s32.totalorder %v408, 0
  %vm417 = vcmp.ne.s32.totalorder %v409, 0
  %vm418 = vcmp.ne.s32.totalorder %v410, 0
  %vm419 = vcmp.ne.s32.totalorder %v411, 0
  %v420 = vsel %vm412, %v350, -1e+12
  %v421 = vsel %vm413, %v351, -1e+12
  %v422 = vsel %vm414, %v352, -1e+12
  %v423 = vsel %vm415, %v353, -1e+12
  %v424 = vsel %vm416, %v354, -1e+12
  %v425 = vsel %vm417, %v355, -1e+12
  %v426 = vsel %vm418, %v356, -1e+12
  %v427 = vsel %vm419, %v357, -1e+12
  %vm428 = vcmask 523264
  %v429 = vsel %vm428, %v420, -inf
  %430 = vmax.xlane.f32.xlu0 %v429
  %v431 = vpop.xlane.xlu0 %430
  %v432 = vsel %vm428, %v421, -inf
  %433 = vmax.xlane.f32.xlu0 %v432
  %v434 = vpop.xlane.xlu0 %433
  %v435 = vsel %vm428, %v422, -inf
  %436 = vmax.xlane.f32.xlu0 %v435
  %v437 = vpop.xlane.xlu0 %436
  %v438 = vsel %vm428, %v423, -inf
  %439 = vmax.xlane.f32.xlu0 %v438
  %v440 = vpop.xlane.xlu0 %439
  %v441 = vsel %vm428, %v424, -inf
  %442 = vmax.xlane.f32.xlu0 %v441
  %v443 = vpop.xlane.xlu0 %442
  %v444 = vsel %vm428, %v425, -inf
  %445 = vmax.xlane.f32.xlu0 %v444
  %v446 = vpop.xlane.xlu0 %445
  %v447 = vsel %vm428, %v426, -inf
  %448 = vmax.xlane.f32.xlu0 %v447
  %v449 = vpop.xlane.xlu0 %448
  %v450 = vsel %vm428, %v427, -inf
  %451 = vmax.xlane.f32.xlu0 %v450
  %v452 = vpop.xlane.xlu0 %451
  %v453 = vsub.f32 %v420, %v431
  %v454 = vsub.f32 %v421, %v434
  %v455 = vsub.f32 %v422, %v437
  %v456 = vsub.f32 %v423, %v440
  %v457 = vsub.f32 %v424, %v443
  %v458 = vsub.f32 %v425, %v446
  %v459 = vsub.f32 %v426, %v449
  %v460 = vsub.f32 %v427, %v452
  %v461 = vmul.f32 %v453, 1.442695
  %v462 = vpow.pop %v461
  %v463 = vmul.f32 %v454, 1.442695
  %v464 = vpow.pop %v463
  %v465 = vmul.f32 %v455, 1.442695
  %v466 = vpow.pop %v465
  %v467 = vmul.f32 %v456, 1.442695
  %v468 = vpow.pop %v467
  %v469 = vmul.f32 %v457, 1.442695
  %v470 = vpow.pop %v469
  %v471 = vmul.f32 %v458, 1.442695
  %v472 = vpow.pop %v471
  %v473 = vmul.f32 %v459, 1.442695
  %v474 = vpow.pop %v473
  %v475 = vmul.f32 %v460, 1.442695
  %v476 = vpow.pop %v475
  %v477 = vsel %vm428, %v462, 0.0
  %478 = vadd.xlane.f32.xlu0 %v477
  %v479 = vpop.xlane.xlu0 %478
  %v480 = vsel %vm428, %v464, 0.0
  %481 = vadd.xlane.f32.xlu0 %v480
  %v482 = vpop.xlane.xlu0 %481
  %v483 = vsel %vm428, %v466, 0.0
  %484 = vadd.xlane.f32.xlu0 %v483
  %v485 = vpop.xlane.xlu0 %484
  %v486 = vsel %vm428, %v468, 0.0
  %487 = vadd.xlane.f32.xlu0 %v486
  %v488 = vpop.xlane.xlu0 %487
  %v489 = vsel %vm428, %v470, 0.0
  %490 = vadd.xlane.f32.xlu0 %v489
  %v491 = vpop.xlane.xlu0 %490
  %v492 = vsel %vm428, %v472, 0.0
  %493 = vadd.xlane.f32.xlu0 %v492
  %v494 = vpop.xlane.xlu0 %493
  %v495 = vsel %vm428, %v474, 0.0
  %496 = vadd.xlane.f32.xlu0 %v495
  %v497 = vpop.xlane.xlu0 %496
  %v498 = vsel %vm428, %v476, 0.0
  %499 = vadd.xlane.f32.xlu0 %v498
  %v500 = vpop.xlane.xlu0 %499
  %v501 = vrcp.pop %v479
  %v502 = vrcp.pop %v482
  %v503 = vrcp.pop %v485
  %v504 = vrcp.pop %v488
  %v505 = vrcp.pop %v491
  %v506 = vrcp.pop %v494
  %v507 = vrcp.pop %v497
  %v508 = vrcp.pop %v500
  %v509 = vmul.f32 %v462, %v501
  %v510 = vmul.f32 %v464, %v502
  %v511 = vmul.f32 %v466, %v503
  %v512 = vmul.f32 %v468, %v504
  %v513 = vmul.f32 %v470, %v505
  %v514 = vmul.f32 %v472, %v506
  %v515 = vmul.f32 %v474, %v507
  %v516 = vmul.f32 %v476, %v508
  %v517 = vld [vmem:[#allocation2] sm:$0xff]
  %v518 = vld [vmem:[#allocation2 + $0x8] sm:$0xff]
  %v519 = vld [vmem:[#allocation2 + $0x10] sm:$0xff]
  %v520 = vld [vmem:[#allocation2 + $0x18] sm:$0xff]
  %v521 = vld [vmem:[#allocation2 + $0x20] sm:$0xff]
  %v522 = vld [vmem:[#allocation2 + $0x28] sm:$0xff]
  %v523 = vld [vmem:[#allocation2 + $0x30] sm:$0xff]
  %v524 = vld [vmem:[#allocation2 + $0x38] sm:$0xff]
  %v526 = vsel %vm428, %v509, 0
  %v529 = vsel %vm428, %v510, 0
  %v532 = vsel %vm428, %v511, 0
  %v535 = vsel %vm428, %v512, 0
  %v538 = vsel %vm428, %v513, 0
  %v541 = vsel %vm428, %v514, 0
  %v544 = vsel %vm428, %v515, 0
  %v547 = vsel %vm428, %v516, 0
  %549 = vmatprep.subr.mxu0 0.0
  %550 = vmatpush1.msra.mxu0 %v517
  %551 = vmatprep.subr.mxu0 0.0
  %552 = vmatpush1.msra.mxu0 %v518
  %553 = vmatprep.subr.mxu0 0.0
  %554 = vmatpush1.msra.mxu0 %v519
  %555 = vmatprep.subr.mxu0 0.0
  %556 = vmatpush1.msra.mxu0 %v520
  %557 = vmatprep.subr.mxu0 0.0
  %558 = vmatpush1.msra.mxu0 %v521
  %559 = vmatprep.subr.mxu0 0.0
  %560 = vmatpush1.msra.mxu0 %v522
  %561 = vmatprep.subr.mxu0 0.0
  %562 = vmatpush1.msra.mxu0 %v523
  %563 = vmatprep.subr.mxu0 0.0
  %564 = vmatpush1.msra.mxu0 %v524
  %565 = vmatprep.subr.mxu0 0.0
  %566 = vmatpush1.msra.mxu0 0.0
  %567 = vmatprep.subr.mxu0 0.0
  %568 = vmatpush1.msra.mxu0 0.0
  %569 = vmatprep.subr.mxu0 0.0
  %570 = vmatpush1.msra.mxu0 0.0
  %571 = vmatprep.subr.mxu0 0.0
  %572 = vmatpush1.msra.mxu0 0.0
  %573 = vmatprep.subr.mxu0 0.0
  %574 = vmatpush1.msra.mxu0 0.0
  %575 = vmatprep.subr.mxu0 0.0
  %576 = vmatpush1.msra.mxu0 0.0
  %577 = vmatprep.subr.mxu0 0.0
  %578 = vmatpush1.msra.mxu0 0.0
  %579 = vmatprep.subr.mxu0 0.0
  %580 = vmatpush1.msra.mxu0 0.0
  %581 = vmatprep.subr.mxu0 0.0
  %582 = vmatpush1.msra.mxu0 0.0
  %583 = vmatprep.subr.mxu0 0.0
  %584 = vmatpush1.msra.mxu0 0.0
  %585 = vmatprep.subr.mxu0 0.0
  %586 = vmatpush1.msra.mxu0 0.0
  %587 = vmatprep.subr.mxu0 0.0
  %588 = vmatpush1.msra.mxu0 0.0
  %589 = vmatprep.subr.mxu0 0.0
  %590 = vmatpush1.msra.mxu0 0.0
  %591 = vmatprep.subr.mxu0 0.0
  %592 = vmatpush1.msra.mxu0 0.0
  %593 = vmatprep.subr.mxu0 0.0
  %594 = vmatpush1.msra.mxu0 0.0
  %595 = vmatprep.subr.mxu0 0.0
  %596 = vmatpush1.msra.mxu0 0.0
  %597 = vmatprep.subr.mxu0 0.0
  %598 = vmatpush1.msra.mxu0 0.0
  %599 = vmatprep.subr.mxu0 0.0
  %600 = vmatpush1.msra.mxu0 0.0
  %601 = vmatprep.subr.mxu0 0.0
  %602 = vmatpush1.msra.mxu0 0.0
  %603 = vmatprep.subr.mxu0 0.0
  %604 = vmatpush1.msra.mxu0 0.0
  %605 = vmatprep.subr.mxu0 0.0
  %606 = vmatpush1.msra.mxu0 0.0
  %607 = vmatprep.subr.mxu0 0.0
  %608 = vmatpush1.msra.mxu0 0.0
  %609 = vmatprep.subr.mxu0 0.0
  %610 = vmatpush1.msra.mxu0 0.0
  %611 = vmatprep.subr.mxu0 0.0
  %612 = vmatpush1.msra.mxu0 0.0
  %613 = vmatprep.mubr.f32.mxu0 0.0
  %614 = vmatmul.mubr.f32.gmra.mrb[0].mxu0 %v526
  %v615 = vpop.f32.mrb[0].mxu0
  %v616 = vadd.f32 0.0, %v615
  %v617 = vpop.f32.mrb[0].mxu0
  %618 = vmatprep.mubr.f32.mxu0 0.0
  %619 = vmatmul.mubr.f32.gmra.mrb[0].mxu0 %v529
  %v620 = vpop.f32.mrb[0].mxu0
  %v621 = vadd.f32 0.0, %v620
  %v622 = vpop.f32.mrb[0].mxu0
  %623 = vmatprep.mubr.f32.mxu0 0.0
  %624 = vmatmul.mubr.f32.gmra.mrb[0].mxu0 %v532
  %v625 = vpop.f32.mrb[0].mxu0
  %v626 = vadd.f32 0.0, %v625
  %v627 = vpop.f32.mrb[0].mxu0
  %628 = vmatprep.mubr.f32.mxu0 0.0
  %629 = vmatmul.mubr.f32.gmra.mrb[0].mxu0 %v535
  %v630 = vpop.f32.mrb[0].mxu0
  %v631 = vadd.f32 0.0, %v630
  %v632 = vpop.f32.mrb[0].mxu0
  %633 = vmatprep.mubr.f32.mxu0 0.0
  %634 = vmatmul.mubr.f32.gmra.mrb[0].mxu0 %v538
  %v635 = vpop.f32.mrb[0].mxu0
  %v636 = vadd.f32 0.0, %v635
  %v637 = vpop.f32.mrb[0].mxu0
  %638 = vmatprep.mubr.f32.mxu0 0.0
  %639 = vmatmul.mubr.f32.gmra.mrb[0].mxu0 %v541
  %v640 = vpop.f32.mrb[0].mxu0
  %v641 = vadd.f32 0.0, %v640
  %v642 = vpop.f32.mrb[0].mxu0
  %643 = vmatprep.mubr.f32.mxu0 0.0
  %644 = vmatmul.mubr.f32.gmra.mrb[0].mxu0 %v544
  %v645 = vpop.f32.mrb[0].mxu0
  %v646 = vadd.f32 0.0, %v645
  %v647 = vpop.f32.mrb[0].mxu0
  %648 = vmatprep.mubr.f32.mxu0 0.0
  %649 = vmatmul.mubr.f32.gmra.mrb[0].mxu0 %v547
  %v650 = vpop.f32.mrb[0].mxu0
  %v651 = vadd.f32 0.0, %v650
  %v652 = vpop.f32.mrb[0].mxu0
  %653 = vdwg.mxu0
  %654 = vst.msk [vmem:[%s5] sm:$0xff] %vm302, %v616
  %655 = vst.msk [vmem:[%s5 + $0x8] sm:$0xff] %vm302, %v621
  %656 = vst.msk [vmem:[%s5 + $0x10] sm:$0xff] %vm302, %v626
  %657 = vst.msk [vmem:[%s5 + $0x18] sm:$0xff] %vm302, %v631
  %658 = vst.msk [vmem:[%s5 + $0x20] sm:$0xff] %vm302, %v636
  %659 = vst.msk [vmem:[%s5 + $0x28] sm:$0xff] %vm302, %v641
  %660 = vst.msk [vmem:[%s5 + $0x30] sm:$0xff] %vm302, %v646
  %661 = vst.msk [vmem:[%s5 + $0x38] sm:$0xff] %vm302, %v651
  // Predicated region
  $region26: #{tpu_custom_call.1} parent=0 // pred_check
    _
  $region27: #{tpu_custom_call.1} parent=0 // pred_check_branch
    %663 = sbr.rel (0) target = $region29
  $region28: #{tpu_custom_call.1} parent=0 // pred_region
    _
  $region29: #{tpu_custom_call.1} parent=0 // pred_fallthru
    _
  // Predicated region
  $region30: #{tpu_custom_call.1} parent=0 // pred_check
    _
  $region31: #{tpu_custom_call.1} parent=0 // pred_check_branch
    %665 = sbr.rel (0) target = $region33
  $region32: #{tpu_custom_call.1} parent=0 // pred_region
    _
  $region33: #{tpu_custom_call.1} parent=0 // pred_fallthru
    _

</llo_original>
